<compile_context>
chip_gen: v7x
topology: tpu7x:2x2x1
jax: 0.10.0
libtpu: 0.0.40
codegen_flags: <defaults>
</compile_context>

<pallas_src>
import functools
import math

import jax
import jax.numpy as jnp
from jax.experimental import pallas as pl
from jax.experimental.pallas import tpu as pltpu


# --------------------------------------------------------------------------- #
# Kernel 1: combined masked relational softmax (computed once, shared by all
# layers):  r_soft = softmax( where(pad!=0 & attn!=0, r_mat, -1e9) )  -> bf16
# --------------------------------------------------------------------------- #
def _rel_softmax_kernel(r_ref, attn_ref, pad_ref, out_ref):
    neg = jnp.float32(-1e9)
    keep = (attn_ref[0] != 0.0) & (pad_ref[0] != 0.0)
    r = jnp.where(keep, r_ref[0], neg)
    m = jnp.max(r, axis=-1, keepdims=True)
    p = jnp.exp(r - m)
    denom = jnp.sum(p, axis=-1, keepdims=True)
    out_ref[0, :, :] = (p * pl.reciprocal(denom, approx=True)).astype(out_ref.dtype)


# --------------------------------------------------------------------------- #
# Kernel 2: one full encoder layer (attention sublayer + FFN sublayer), tiled
# over query rows.  Optionally applies the encoder's final LayerNorm.
# --------------------------------------------------------------------------- #
def _inr_layer_kernel(x_q_ref, x_kv_ref, r_ref,
                      ln0_w_ref, ln0_b_ref, ln1_w_ref, ln1_b_ref,
                      w1_ref, b1_ref, w2_ref, b2_ref,
                      fn_w_ref, fn_b_ref,
                      out_ref, *, d_true, apply_final_norm):
    eps = jnp.float32(1e-5)
    inv_d = jnp.float32(1.0 / d_true)
    scale = jnp.float32(1.0 / math.sqrt(d_true))

    def layer_norm(v, w, b):
        # Single-pass stats over the TRUE feature width D (padded lanes of v are
        # exactly 0, padded lanes of w/b are 0, so padded lanes of the result stay 0).
        mu = jnp.sum(v, axis=-1, keepdims=True) * inv_d
        ex2 = jnp.sum(v * v, axis=-1, keepdims=True) * inv_d
        var = ex2 - mu * mu
        return (v - mu) * jax.lax.rsqrt(var + eps) * w + b

    x_q = x_q_ref[0]      # (tq, Dp) f32 query rows of the residual stream
    x_kv = x_kv_ref[0]    # (S,  Dp) f32 all rows (key/value side)

    ln0_w = ln0_w_ref[...]
    ln0_b = ln0_b_ref[...]
    h_q = layer_norm(x_q, ln0_w, ln0_b)
    h_kv = layer_norm(x_kv, ln0_w, ln0_b)
    h_q16 = h_q.astype(jnp.bfloat16)
    h_kv16 = h_kv.astype(jnp.bfloat16)

    # scores = (LN(x) LN(x)^T)/sqrt(D) + r_soft   -- NT matmul on the MXU, f32 acc.
    scores = jax.lax.dot_general(
        h_q16, h_kv16, (((1,), (1,)), ((), ())),
        preferred_element_type=jnp.float32) * scale            # (tq, S) f32
    scores = scores + r_ref[0].astype(jnp.float32)

    # hand-rolled row softmax; divide replaced by EUP approximate reciprocal
    m = jnp.max(scores, axis=-1, keepdims=True)
    p = jnp.exp(scores - m)
    denom = jnp.sum(p, axis=-1, keepdims=True)
    prob = p * pl.reciprocal(denom, approx=True)               # (tq, S) f32

    attn = jnp.dot(prob.astype(jnp.bfloat16), h_kv16,
                   preferred_element_type=jnp.float32)          # (tq, Dp) f32
    x1 = x_q + attn

    # FFN sublayer (pre-LN residual), bf16 operands, f32 accumulation.
    h2 = layer_norm(x1, ln1_w_ref[...], ln1_b_ref[...])
    hid = jnp.dot(h2.astype(jnp.bfloat16), w1_ref[...],
                  preferred_element_type=jnp.float32) + b1_ref[...]
    hid = jnp.maximum(hid, 0.0)
    ffn = jnp.dot(hid.astype(jnp.bfloat16), w2_ref[...],
                  preferred_element_type=jnp.float32) + b2_ref[...]
    y = x1 + ffn

    if apply_final_norm:
        y = layer_norm(y, fn_w_ref[...], fn_b_ref[...])

    out_ref[0, :, :] = y.astype(out_ref.dtype)


# --------------------------------------------------------------------------- #
# Wrappers
# --------------------------------------------------------------------------- #
def _round_up(n: int, m: int) -> int:
    return ((n + m - 1) // m) * m


def _pick_q_tile(s: int) -> int:
    # multiples of 16 (bf16 sublane packing) or the full extent for tiny S
    for t in (256, 128, 64, 32, 16):
        if s >= t and s % t == 0:
            return t
    return s


def _make_layer_call(B, S, Dp, Hp, tq, d_true, apply_final_norm):
    n_q = S // tq
    bcast2 = lambda b, q: (0, 0)
    kernel = functools.partial(_inr_layer_kernel, d_true=d_true,
                               apply_final_norm=apply_final_norm)
    return pl.pallas_call(
        kernel,
        out_shape=jax.ShapeDtypeStruct((B, S, Dp), jnp.float32),
        grid_spec=pltpu.PrefetchScalarGridSpec(
            num_scalar_prefetch=0,
            grid=(B, n_q),
            in_specs=[
                pl.BlockSpec((1, tq, Dp), lambda b, q: (b, q, 0)),   # x (query rows)
                pl.BlockSpec((1, S, Dp), lambda b, q: (b, 0, 0)),    # x (all rows, K/V)
                pl.BlockSpec((1, tq, S), lambda b, q: (b, q, 0)),    # r_soft (bf16)
                pl.BlockSpec((1, Dp), bcast2),   # ln0 weight
                pl.BlockSpec((1, Dp), bcast2),   # ln0 bias
                pl.BlockSpec((1, Dp), bcast2),   # ln1 weight
                pl.BlockSpec((1, Dp), bcast2),   # ln1 bias
                pl.BlockSpec((Dp, Hp), bcast2),  # w1 (bf16)
                pl.BlockSpec((1, Hp), bcast2),   # b1
                pl.BlockSpec((Hp, Dp), bcast2),  # w2 (bf16)
                pl.BlockSpec((1, Dp), bcast2),   # b2
                pl.BlockSpec((1, Dp), bcast2),   # final-norm weight
                pl.BlockSpec((1, Dp), bcast2),   # final-norm bias
            ],
            out_specs=pl.BlockSpec((1, tq, Dp), lambda b, q: (b, q, 0)),
        ),
        compiler_params=pltpu.CompilerParams(
            dimension_semantics=("parallel", "parallel"),
            vmem_limit_bytes=48 * 1024 * 1024,   # sized for v7x's 64 MiB physical VMEM
        ),
    )


def inr_encoder(x, r_mat, attn_mask, pad_mask, layer_params, final_norm):
    """x: (B,S,D) f32; r_mat/attn_mask/pad_mask: (B,S,S) f32 (0.0 = masked).
    layer_params: list of per-layer dicts; final_norm: {"w","b"} of shape (1,D)."""
    B, S, D = x.shape
    H = layer_params[0]["w1"].shape[1]
    Dp = _round_up(max(D, 128), 128)   # lane-dense feature width
    Hp = _round_up(max(H, 128), 128)   # lane-dense FFN width
    tq = _pick_q_tile(S)
    n_q = S // tq

    # --- relational softmax computed once, streamed as a single bf16 tensor ---
    r_soft = pl.pallas_call(
        _rel_softmax_kernel,
        out_shape=jax.ShapeDtypeStruct((B, S, S), jnp.bfloat16),
        grid_spec=pltpu.PrefetchScalarGridSpec(
            num_scalar_prefetch=0,
            grid=(B, n_q),
            in_specs=[pl.BlockSpec((1, tq, S), lambda b, q: (b, q, 0))] * 3,
            out_specs=pl.BlockSpec((1, tq, S), lambda b, q: (b, q, 0)),
        ),
        compiler_params=pltpu.CompilerParams(
            dimension_semantics=("parallel", "parallel"),
            vmem_limit_bytes=48 * 1024 * 1024,
        ),
    )(r_mat, attn_mask, pad_mask)

    def pad_last(a, cols):
        return jnp.pad(a, ((0, 0),) * (a.ndim - 1) + ((0, cols - a.shape[-1],),))

    xp = jnp.pad(x.astype(jnp.float32), ((0, 0), (0, 0), (0, Dp - D)))
    fn_w = pad_last(final_norm["w"], Dp)
    fn_b = pad_last(final_norm["b"], Dp)

    depth = len(layer_params)
    mid_call = _make_layer_call(B, S, Dp, Hp, tq, D, apply_final_norm=False)
    last_call = _make_layer_call(B, S, Dp, Hp, tq, D, apply_final_norm=True)

    for li, p in enumerate(layer_params):
        w1 = jnp.pad(p["w1"], ((0, Dp - D), (0, Hp - H))).astype(jnp.bfloat16)
        w2 = jnp.pad(p["w2"], ((0, Hp - H), (0, Dp - D))).astype(jnp.bfloat16)
        call = last_call if li == depth - 1 else mid_call
        xp = call(xp, xp, r_soft,
                  pad_last(p["ln0_w"], Dp), pad_last(p["ln0_b"], Dp),
                  pad_last(p["ln1_w"], Dp), pad_last(p["ln1_b"], Dp),
                  w1, pad_last(p["b1"], Hp), w2, pad_last(p["b2"], Dp),
                  fn_w, fn_b)

    return xp[..., :D]


# --------------------------------------------------------------------------- #
# Precision-matched pure-JAX reference (same bf16 matmul-operand policy).
# --------------------------------------------------------------------------- #
def _reference(x, r_mat, attn_mask, pad_mask, layer_params, final_norm):
    eps = 1e-5

    def ln(v, w, b):
        mu = jnp.mean(v, axis=-1, keepdims=True)
        var = jnp.mean((v - mu) ** 2, axis=-1, keepdims=True)
        return (v - mu) / jnp.sqrt(var + eps) * w + b

    D = x.shape[-1]
    keep = (pad_mask != 0.0) & (attn_mask != 0.0)
    r = jnp.where(keep, r_mat, -1e9)
    r_soft = jax.nn.softmax(r, axis=-1).astype(jnp.bfloat16).astype(jnp.float32)

    for p in layer_params:
        h = ln(x, p["ln0_w"][0], p["ln0_b"][0])
        hb = h.astype(jnp.bfloat16)
        s = jnp.einsum("bqd,bkd->bqk", hb, hb,
                       preferred_element_type=jnp.float32) / math.sqrt(D)
        prob = jax.nn.softmax(s + r_soft, axis=-1)
        x1 = x + jnp.einsum("bqk,bkd->bqd", prob.astype(jnp.bfloat16), hb,
                            preferred_element_type=jnp.float32)
        h2 = ln(x1, p["ln1_w"][0], p["ln1_b"][0])
        hid = jnp.maximum(
            jnp.einsum("bsd,dh->bsh", h2.astype(jnp.bfloat16),
                       p["w1"].astype(jnp.bfloat16),
                       preferred_element_type=jnp.float32) + p["b1"][0], 0.0)
        x = x1 + jnp.einsum("bsh,hd->bsd", hid.astype(jnp.bfloat16),
                            p["w2"].astype(jnp.bfloat16),
                            preferred_element_type=jnp.float32) + p["b2"][0]

    return ln(x, final_norm["w"][0], final_norm["b"][0])


# --------------------------------------------------------------------------- #
if __name__ == "__main__":
    B, S, D = 2, 8, 32
    H = 2 * D
    depth = 2

    key = jax.random.PRNGKey(0)
    keys = jax.random.split(key, 4 + depth)

    x = jax.random.normal(keys[0], (B, S, D), dtype=jnp.float32)
    r_mat = jax.random.normal(keys[1], (B, S, S), dtype=jnp.float32)
    # float masks: 1.0 = keep, 0.0 = masked (matches `mask == 0.0` semantics)
    attn_mask = (jax.random.uniform(keys[2], (B, S, S)) > 0.2).astype(jnp.float32)
    pad_mask = (jax.random.uniform(keys[3], (B, S, S)) > 0.1).astype(jnp.float32)

    def make_layer_params(k):
        ks = jax.random.split(k, 8)
        return {
            "ln0_w": 1.0 + 0.1 * jax.random.normal(ks[0], (1, D), jnp.float32),
            "ln0_b": 0.01 * jax.random.normal(ks[1], (1, D), jnp.float32),
            "ln1_w": 1.0 + 0.1 * jax.random.normal(ks[2], (1, D), jnp.float32),
            "ln1_b": 0.01 * jax.random.normal(ks[3], (1, D), jnp.float32),
            "w1": jax.random.normal(ks[4], (D, H), jnp.float32) / math.sqrt(D),
            "b1": 0.01 * jax.random.normal(ks[5], (1, H), jnp.float32),
            "w2": jax.random.normal(ks[6], (H, D), jnp.float32) / math.sqrt(H),
            "b2": 0.01 * jax.random.normal(ks[7], (1, D), jnp.float32),
        }

    layer_params = [make_layer_params(keys[4 + i]) for i in range(depth)]
    final_norm = {"w": jnp.ones((1, D), jnp.float32),
                  "b": jnp.zeros((1, D), jnp.float32)}

    out = inr_encoder(x, r_mat, attn_mask, pad_mask, layer_params, final_norm)
    out = jax.block_until_ready(out)

    ref = _reference(x, r_mat, attn_mask, pad_mask, layer_params, final_norm)

    assert out.shape == (B, S, D)
    assert not bool(jnp.any(jnp.isnan(out))), "NaN in kernel output"
    # tolerance covers pl.reciprocal(approx=True) and bf16-operand MXU accumulation
    assert jnp.allclose(out, ref, atol=2e-2, rtol=2e-2), "mismatch vs JAX reference"

    print("KERNEL_OK")
</pallas_src>

<mosaic_0001>
module attributes {stable_mosaic.version = 11 : i64} {
  func.func @_rel_softmax_kernel(%arg0: i32, %arg1: i32, %arg2: memref<1x8x8xf32, #tpu.memory_space<vmem>>, %arg3: memref<1x8x8xf32, #tpu.memory_space<vmem>>, %arg4: memref<1x8x8xf32, #tpu.memory_space<vmem>>, %arg5: memref<1x8x8xbf16, #tpu.memory_space<vmem>>) attributes {dimension_semantics = [#tpu.dimension_semantics<parallel>, #tpu.dimension_semantics<parallel>], iteration_bounds = array<i64: 2, 1>, scalar_prefetch = 0 : i64, scratch_operands = 0 : i64, tpu.core_type = #tpu.core_type<tc>, window_params = [{transform_indices = @transform_0, window_bounds = array<i64: 1, 8, 8>}, {transform_indices = @transform_1, window_bounds = array<i64: 1, 8, 8>}, {transform_indices = @transform_2, window_bounds = array<i64: 1, 8, 8>}, {transform_indices = @transform_3, window_bounds = array<i64: 1, 8, 8>}]} {
    %c0 = arith.constant 0 : index
    %c0_0 = arith.constant 0 : index
    %c0_1 = arith.constant 0 : index
    %0 = vector.load %arg3[%c0, %c0_0, %c0_1] : memref<1x8x8xf32, #tpu.memory_space<vmem>>, vector<1x8x8xf32>
    %1 = vector.shape_cast %0 : vector<1x8x8xf32> to vector<8x8xf32>
    %cst = arith.constant 0.000000e+00 : f32
    %2 = vector.broadcast %cst : f32 to vector<8x8xf32>
    %3 = arith.cmpf one, %1, %2 : vector<8x8xf32>
    %c0_2 = arith.constant 0 : index
    %c0_3 = arith.constant 0 : index
    %c0_4 = arith.constant 0 : index
    %4 = vector.load %arg4[%c0_2, %c0_3, %c0_4] : memref<1x8x8xf32, #tpu.memory_space<vmem>>, vector<1x8x8xf32>
    %5 = vector.shape_cast %4 : vector<1x8x8xf32> to vector<8x8xf32>
    %cst_5 = arith.constant 0.000000e+00 : f32
    %6 = vector.broadcast %cst_5 : f32 to vector<8x8xf32>
    %7 = arith.cmpf one, %5, %6 : vector<8x8xf32>
    %8 = arith.andi %3, %7 : vector<8x8xi1>
    %c0_6 = arith.constant 0 : index
    %c0_7 = arith.constant 0 : index
    %c0_8 = arith.constant 0 : index
    %9 = vector.load %arg2[%c0_6, %c0_7, %c0_8] : memref<1x8x8xf32, #tpu.memory_space<vmem>>, vector<1x8x8xf32>
    %10 = vector.shape_cast %9 : vector<1x8x8xf32> to vector<8x8xf32>
    %cst_9 = arith.constant -1.000000e+09 : f32
    %11 = vector.broadcast %cst_9 : f32 to vector<8x8xf32>
    %12 = arith.select %8, %10, %11 : vector<8x8xi1>, vector<8x8xf32>
    %cst_10 = arith.constant dense<0xFF800000> : vector<8xf32>
    %13 = vector.multi_reduction <maximumf>, %12, %cst_10 [1] : vector<8x8xf32> to vector<8xf32>
    %14 = vector.shape_cast %13 : vector<8xf32> to vector<8x1xf32>
    %15 = vector.broadcast %14 : vector<8x1xf32> to vector<8x8xf32>
    %16 = arith.subf %12, %15 : vector<8x8xf32>
    %17 = math.exp %16 : vector<8x8xf32>
    %cst_11 = arith.constant dense<0.000000e+00> : vector<8xf32>
    %18 = vector.multi_reduction <add>, %17, %cst_11 [1] : vector<8x8xf32> to vector<8xf32>
    %19 = vector.shape_cast %18 : vector<8xf32> to vector<8x1xf32>
    %20 = tpu.reciprocal %19 {approx = true} : vector<8x1xf32> -> vector<8x1xf32>
    %21 = vector.broadcast %20 : vector<8x1xf32> to vector<8x8xf32>
    %22 = arith.mulf %17, %21 : vector<8x8xf32>
    %23 = arith.truncf %22 : vector<8x8xf32> to vector<8x8xbf16>
    %c0_12 = arith.constant 0 : index
    %c0_13 = arith.constant 0 : index
    %c0_14 = arith.constant 0 : index
    %24 = vector.load %arg5[%c0_12, %c0_13, %c0_14] : memref<1x8x8xbf16, #tpu.memory_space<vmem>>, vector<1x8x8xbf16>
    %25 = vector.shape_cast %24 : vector<1x8x8xbf16> to vector<8x8xbf16>
    %26 = vector.shape_cast %23 : vector<8x8xbf16> to vector<1x8x8xbf16>
    tpu.vector_store %arg5[%c0_12, %c0_13, %c0_14], %26 {strides = array<i32>} : memref<1x8x8xbf16, #tpu.memory_space<vmem>>, vector<1x8x8xbf16>,
    return
  }
  func.func @transform_0(%arg0: i32, %arg1: i32) -> (i32, i32, i32) {
    %c0_i32 = arith.constant 0 : i32
    %c0_i32_0 = arith.constant 0 : i32
    return %arg0, %arg1, %c0_i32 : i32, i32, i32
  }
  func.func @transform_1(%arg0: i32, %arg1: i32) -> (i32, i32, i32) {
    %c0_i32 = arith.constant 0 : i32
    %c0_i32_0 = arith.constant 0 : i32
    return %arg0, %arg1, %c0_i32 : i32, i32, i32
  }
  func.func @transform_2(%arg0: i32, %arg1: i32) -> (i32, i32, i32) {
    %c0_i32 = arith.constant 0 : i32
    %c0_i32_0 = arith.constant 0 : i32
    return %arg0, %arg1, %c0_i32 : i32, i32, i32
  }
  func.func @transform_3(%arg0: i32, %arg1: i32) -> (i32, i32, i32) {
    %c0_i32 = arith.constant 0 : i32
    %c0_i32_0 = arith.constant 0 : i32
    return %arg0, %arg1, %c0_i32 : i32, i32, i32
  }
}

</mosaic_0001>

<llo_original>
// kernel: tpu_custom_call.1
$region0: #{tpu_custom_call.1}
  #allocation0 [shape = 'u32[]', space=smem, size = 0x4, offset = 0x4, fixed_abs, tag = 'smem constant byte address 0x4 - core index']
  #allocation1 [shape = 'u32[144,128]{1,0:T(1,128)}', space=vmem, size = 0x12000, scoped, tag = 'internal scratch']
  %s0 = inlined_call_operand.hbm [shape: f32[2,8,8], index: 0, kind: input, shape index: {}]
  %s1 = inlined_call_operand.hbm [shape: f32[2,8,8], index: 1, kind: input, shape index: {}]
  %s2 = inlined_call_operand.hbm [shape: f32[2,8,8], index: 2, kind: input, shape index: {}]
  %s3 = inlined_call_operand.hbm [shape: bf16[2,8,8], index: 3, kind: output, shape index: {}]
  %s4 = sld [smem:[#allocation0]]
  $region57: #{tpu_custom_call.1} parent=0
    _
  %s6 = ssub.s32 1, %s4
  %s7 = scalar_select 0, %s6, %s4
  $region1: #{tpu_custom_call.1} parent=0
    #allocation2 [shape = 'u8[8192]{0}', space=vmem, size = 0x2000, scoped, tag = 'input window, operand 0']
    #allocation3 [shape = 's32[2]{0}', space=sflag, size = 0x8, scoped, tag = 'scoped memory for tpu_custom_call.1']
    #allocation4 [shape = 's32[2]{0}', space=sflag, size = 0x8, scoped, tag = 'scoped memory for tpu_custom_call.1']
    #allocation5 [shape = 'u8[8192]{0}', space=vmem, size = 0x2000, scoped, tag = 'input window, operand 1']
    #allocation6 [shape = 's32[2]{0}', space=sflag, size = 0x8, scoped, tag = 'scoped memory for tpu_custom_call.1']
    #allocation7 [shape = 'u8[8192]{0}', space=vmem, size = 0x2000, scoped, tag = 'input window, operand 2']
    #allocation8 [shape = 'u8[4096]{0}', space=vmem, size = 0x1000, scoped, tag = 'output window, operand 0']
    %8 = vsyncpa [#allocation3], 0
    %s9 = scalar_lea.sflag [#allocation3], 1
    %10 = vsyncpa %s9, 0
    %11 = vsyncpa [#allocation6], 0
    %s12 = scalar_lea.sflag [#allocation6], 1
    %13 = vsyncpa %s12, 0
    %14 = vsyncpa [#allocation4], 0
    %s15 = scalar_lea.sflag [#allocation4], 1
    %16 = vsyncpa %s15, 0
    loop: start=0, step=1, limit=4
    $region2: #{tpu_custom_call.1} parent=1 // loop_pre_header
      _
    $region3: #{tpu_custom_call.1} parent=1 // loop_header
      %s18 = sphi 0, %s22
      %p19 = scmp.ge.s32.totalorder %s18, 4
      %s25 = sphi 0, %s37
      %s26 = sphi 0, %s33
      %s27 = sphi 0, %s25
      %s28 = sphi 0, %s26
      %s29 = sphi 0, %s27
      %s30 = sphi 0, %s28
      %s42 = sphi 0, %s44
      %s45 = sphi 0, %s42
      %s46 = sphi 0, %s45
      %s62 = sphi 0, %s46
      %s70 = sphi 0, %s72
      %s73 = sphi 0, %s70
      %s74 = sphi 0, %s73
      %s90 = sphi 0, %s74
      %s98 = sphi 0, %s100
      %s101 = sphi 0, %s98
      %s102 = sphi 0, %s101
      %s118 = sphi 0, %s102
      %s126 = sphi 0, %s128
      %s129 = sphi 0, %s126
      %s130 = sphi 0, %s129
      %s146 = sphi 0, %s130
    $region4: #{tpu_custom_call.1} parent=1 // loop_header_branch
      %21 = sbr.rel (%p19) target = $region8
    $region5: #{tpu_custom_call.1} parent=1 // loop_body
      %s23 = ssub.s32 %s18, 1
      %s24 = ssub.s32 %s18, 2
      %s31 = sadd.s32 1, %s26
      %p32 = scmp.ge.s32.totalorder %s31, 1
      %s33 = scalar_select %p32, 0, %s31
      %s34 = sadd.s32 1, %s25
      %s35 = scalar_select %p32, %s34, %s25
      %p36 = scmp.ge.s32.totalorder %s35, 2
      %s37 = scalar_select %p36, 0, %s35
      %s38 = ssub.s32 %s25, %s37
      %s39 = ssub.s32 %s26, %s33
      %s40 = sor.u32 %s38, %s39
      %p41 = scmp.eq.s32.totalorder %s40, 0
      %s43 = sadd.s32 %s42, 1
      %s44 = scalar_select %p41, %s42, %s43
      %p47 = pneg %p41
      %p48 = scmp.eq.s32.totalorder %s18, 1
      %p49 = por %p47, %p48
      %p50 = scmp.ne.s32.totalorder %s42, %s45
      %p51 = scmp.eq.s32.totalorder %s18, 0
      %p52 = por %p50, %p51
      %p53 = scmp.ne.s32.totalorder %s42, %s45
      %p54 = scmp.eq.s32.totalorder %s23, 1
      %p55 = por %p53, %p54
      %p56 = scmp.ne.s32.totalorder %s45, %s46
      %p57 = scmp.eq.s32.totalorder %s23, 0
      %p58 = por %p56, %p57
      %p59 = scmp.ne.s32.totalorder %s45, %s46
      %p60 = scmp.eq.s32.totalorder %s24, 1
      %p61 = por %p59, %p60
      %p63 = scmp.ne.s32.totalorder %s46, %s62
      %p64 = scmp.eq.s32.totalorder %s24, 0
      %p65 = por %p63, %p64
      %s66 = ssub.s32 %s25, %s37
      %s67 = ssub.s32 %s26, %s33
      %s68 = sor.u32 %s66, %s67
      %p69 = scmp.eq.s32.totalorder %s68, 0
      %s71 = sadd.s32 %s70, 1
      %s72 = scalar_select %p69, %s70, %s71
      %p75 = pneg %p69
      %p76 = scmp.eq.s32.totalorder %s18, 1
      %p77 = por %p75, %p76
      %p78 = scmp.ne.s32.totalorder %s70, %s73
      %p79 = scmp.eq.s32.totalorder %s18, 0
      %p80 = por %p78, %p79
      %p81 = scmp.ne.s32.totalorder %s70, %s73
      %p82 = scmp.eq.s32.totalorder %s23, 1
      %p83 = por %p81, %p82
      %p84 = scmp.ne.s32.totalorder %s73, %s74
      %p85 = scmp.eq.s32.totalorder %s23, 0
      %p86 = por %p84, %p85
      %p87 = scmp.ne.s32.totalorder %s73, %s74
      %p88 = scmp.eq.s32.totalorder %s24, 1
      %p89 = por %p87, %p88
      %p91 = scmp.ne.s32.totalorder %s74, %s90
      %p92 = scmp.eq.s32.totalorder %s24, 0
      %p93 = por %p91, %p92
      %s94 = ssub.s32 %s25, %s37
      %s95 = ssub.s32 %s26, %s33
      %s96 = sor.u32 %s94, %s95
      %p97 = scmp.eq.s32.totalorder %s96, 0
      %s99 = sadd.s32 %s98, 1
      %s100 = scalar_select %p97, %s98, %s99
      %p103 = pneg %p97
      %p104 = scmp.eq.s32.totalorder %s18, 1
      %p105 = por %p103, %p104
      %p106 = scmp.ne.s32.totalorder %s98, %s101
      %p107 = scmp.eq.s32.totalorder %s18, 0
      %p108 = por %p106, %p107
      %p109 = scmp.ne.s32.totalorder %s98, %s101
      %p110 = scmp.eq.s32.totalorder %s23, 1
      %p111 = por %p109, %p110
      %p112 = scmp.ne.s32.totalorder %s101, %s102
      %p113 = scmp.eq.s32.totalorder %s23, 0
      %p114 = por %p112, %p113
      %p115 = scmp.ne.s32.totalorder %s101, %s102
      %p116 = scmp.eq.s32.totalorder %s24, 1
      %p117 = por %p115, %p116
      %p119 = scmp.ne.s32.totalorder %s102, %s118
      %p120 = scmp.eq.s32.totalorder %s24, 0
      %p121 = por %p119, %p120
      %s122 = ssub.s32 %s25, %s37
      %s123 = ssub.s32 %s26, %s33
      %s124 = sor.u32 %s122, %s123
      %p125 = scmp.eq.s32.totalorder %s124, 0
      %s127 = sadd.s32 %s126, 1
      %s128 = scalar_select %p125, %s126, %s127
      %p131 = pneg %p125
      %p132 = scmp.eq.s32.totalorder %s18, 1
      %p133 = por %p131, %p132
      %p134 = scmp.ne.s32.totalorder %s126, %s129
      %p135 = scmp.eq.s32.totalorder %s18, 0
      %p136 = por %p134, %p135
      %p137 = scmp.ne.s32.totalorder %s126, %s129
      %p138 = scmp.eq.s32.totalorder %s23, 1
      %p139 = por %p137, %p138
      %p140 = scmp.ne.s32.totalorder %s129, %s130
      %p141 = scmp.eq.s32.totalorder %s23, 0
      %p142 = por %p140, %p141
      %p143 = scmp.ne.s32.totalorder %s129, %s130
      %p144 = scmp.eq.s32.totalorder %s24, 1
      %p145 = por %p143, %p144
      %p147 = scmp.ne.s32.totalorder %s130, %s146
      %p148 = scmp.eq.s32.totalorder %s24, 0
      %p149 = por %p147, %p148
      %p150 = scmp.le.s32.totalorder 1, %s18
      %p151 = scmp.lt.s32.totalorder %s18, 3
      %p152 = pnand %p150, %p151
      %p153 = pneg %p152
      // Predicated region
      $region9: #{tpu_custom_call.1} parent=5 // pred_check
        _
      $region10: #{tpu_custom_call.1} parent=5 // pred_check_branch
        %155 = sbr.rel (%p152) target = $region12
      $region11: #{tpu_custom_call.1} parent=5 // pred_region
        %s156 = ssub.s32 %s18, 1
      $region12: #{tpu_custom_call.1} parent=5 // pred_fallthru
        _
      %p157 = scmp.lt.s32.totalorder %s18, 2
      // Predicated region
      $region13: #{tpu_custom_call.1} parent=5 // pred_check
        %p158 = pneg %p157
      $region14: #{tpu_custom_call.1} parent=5 // pred_check_branch
        %160 = sbr.rel (%p158) target = $region16
      $region15: #{tpu_custom_call.1} parent=5 // pred_region
        // Predicated region
        $region17: #{tpu_custom_call.1} parent=15 // pred_check
          %p161 = pneg %p52
        $region18: #{tpu_custom_call.1} parent=15 // pred_check_branch
          %163 = sbr.rel (%p161) target = $region20
        $region19: #{tpu_custom_call.1} parent=15 // pred_region
          %s164 = sand.u32 %s42, 1
          %s165 = scalar_lea.sflag [#allocation3], %s164
          %s166 = sand.u32 %s42, 1
          %s167 = smul.addr %s166, 8
          %s168 = scalar_lea.vmem [#allocation2], %s167
          %s170 = ssub.s32 128, 128
          %171 = vsyncadd %s165, %s170
          %s172 = sadd.s32 %s26, %s25
          %s173 = smul.addr %s172, 128
          %s174 = scalar_lea.hbm %s0, %s173
          %s176 = sshll.u32 %s168, 4
          %s177 = int_to_ptr.vmem [resolvable:$true] %s176
          %179 = dma.hbm_to_vmem [thread:$0]  %s174, 128, %s177, %s165
        $region20: #{tpu_custom_call.1} parent=15 // pred_fallthru
          _
        // Predicated region
        $region21: #{tpu_custom_call.1} parent=15 // pred_check
          %p180 = pneg %p80
        $region22: #{tpu_custom_call.1} parent=15 // pred_check_branch
          %182 = sbr.rel (%p180) target = $region24
        $region23: #{tpu_custom_call.1} parent=15 // pred_region
          %s183 = sand.u32 %s18, 1
          %s184 = scalar_lea.sflag [#allocation6], %s183
          %s185 = sand.u32 %s70, 1
          %s186 = smul.addr %s185, 8
          %s187 = scalar_lea.vmem [#allocation5], %s186
          %s189 = ssub.s32 128, 128
          %190 = vsyncadd %s184, %s189
          %s191 = sadd.s32 %s26, %s25
          %s192 = smul.addr %s191, 128
          %s193 = scalar_lea.hbm %s1, %s192
          %s195 = sshll.u32 %s187, 4
          %s196 = int_to_ptr.vmem [resolvable:$true] %s195
          %198 = dma.hbm_to_vmem [thread:$0]  %s193, 128, %s196, %s184
        $region24: #{tpu_custom_call.1} parent=15 // pred_fallthru
          _
        // Predicated region
        $region25: #{tpu_custom_call.1} parent=15 // pred_check
          %p199 = pneg %p108
        $region26: #{tpu_custom_call.1} parent=15 // pred_check_branch
          %201 = sbr.rel (%p199) target = $region28
        $region27: #{tpu_custom_call.1} parent=15 // pred_region
          %s202 = sand.u32 %s18, 1
          %s203 = scalar_lea.sflag [#allocation6], %s202
          %s204 = sand.u32 %s98, 1
          %s205 = smul.addr %s204, 8
          %s206 = scalar_lea.vmem [#allocation7], %s205
          %s208 = ssub.s32 128, 128
          %209 = vsyncadd %s203, %s208
          %s210 = sadd.s32 %s26, %s25
          %s211 = smul.addr %s210, 128
          %s212 = scalar_lea.hbm %s2, %s211
          %s214 = sshll.u32 %s206, 4
          %s215 = int_to_ptr.vmem [resolvable:$true] %s214
          %217 = dma.hbm_to_vmem [thread:$0]  %s212, 128, %s215, %s203
        $region28: #{tpu_custom_call.1} parent=15 // pred_fallthru
          _
      $region16: #{tpu_custom_call.1} parent=5 // pred_fallthru
        _
      %p218 = scmp.le.s32.totalorder 1, %s18
      %p219 = scmp.lt.s32.totalorder %s18, 3
      %p220 = pnand %p218, %p219
      %p221 = pneg %p220
      // Predicated region
      $region29: #{tpu_custom_call.1} parent=5 // pred_check
        _
      $region30: #{tpu_custom_call.1} parent=5 // pred_check_branch
        %223 = sbr.rel (%p220) target = $region32
      $region31: #{tpu_custom_call.1} parent=5 // pred_region
        %s224 = ssub.s32 %s18, 1
        %s225 = sand.u32 %s45, 1
        %s226 = scalar_lea.sflag [#allocation3], %s225
        %s227 = sand.u32 %s45, 1
        %s228 = smul.addr %s227, 8
        %s229 = scalar_lea.vmem [#allocation2], %s228
        // Predicated region
        $region33: #{tpu_custom_call.1} parent=31 // pred_check
          %p230 = pneg %p58
        $region34: #{tpu_custom_call.1} parent=31 // pred_check_branch
          %232 = sbr.rel (%p230) target = $region36
        $region35: #{tpu_custom_call.1} parent=31 // pred_region
          %233 = dma.done %s226, 128
        $region36: #{tpu_custom_call.1} parent=31 // pred_fallthru
          _
        %s234 = sand.u32 %s23, 1
        %s235 = scalar_lea.sflag [#allocation6], %s234
        %s236 = sand.u32 %s73, 1
        %s237 = smul.addr %s236, 8
        %s238 = scalar_lea.vmem [#allocation5], %s237
        // Predicated region
        $region37: #{tpu_custom_call.1} parent=31 // pred_check
          %p239 = pneg %p86
        $region38: #{tpu_custom_call.1} parent=31 // pred_check_branch
          %241 = sbr.rel (%p239) target = $region40
        $region39: #{tpu_custom_call.1} parent=31 // pred_region
          %242 = dma.done %s235, 128
        $region40: #{tpu_custom_call.1} parent=31 // pred_fallthru
          _
        %s243 = sand.u32 %s23, 1
        %s244 = scalar_lea.sflag [#allocation6], %s243
        %s245 = sand.u32 %s101, 1
        %s246 = smul.addr %s245, 8
        %s247 = scalar_lea.vmem [#allocation7], %s246
        // Predicated region
        $region41: #{tpu_custom_call.1} parent=31 // pred_check
          %p248 = pneg %p114
        $region42: #{tpu_custom_call.1} parent=31 // pred_check_branch
          %250 = sbr.rel (%p248) target = $region44
        $region43: #{tpu_custom_call.1} parent=31 // pred_region
          %251 = dma.done %s244, 128
        $region44: #{tpu_custom_call.1} parent=31 // pred_fallthru
          _
        %s252 = sand.u32 %s45, 1
        %s253 = scalar_lea.sflag [#allocation3], %s252
        %s254 = sand.u32 %s45, 1
        %s255 = smul.addr %s254, 8
        %s256 = scalar_lea.vmem [#allocation2], %s255
        %p257 = pneg %p58
        %p258 = pneg %p55
        %s259 = sand.u32 %s23, 1
        %s260 = scalar_lea.sflag [#allocation6], %s259
        %s261 = sand.u32 %s73, 1
        %s262 = smul.addr %s261, 8
        %s263 = scalar_lea.vmem [#allocation5], %s262
        %p264 = pneg %p86
        %p265 = pneg %p83
        %s266 = sand.u32 %s23, 1
        %s267 = scalar_lea.sflag [#allocation6], %s266
        %s268 = sand.u32 %s101, 1
        %s269 = smul.addr %s268, 8
        %s270 = scalar_lea.vmem [#allocation7], %s269
        %p271 = pneg %p114
        %p272 = pneg %p111
        %p273 = pneg %p142
        %p274 = pneg %p139
        %s275 = sand.u32 %s129, 1
        %s276 = scalar_lea.sflag [#allocation4], %s275
        %s277 = sand.u32 %s129, 1
        %s278 = smul.addr %s277, 4
        %s279 = scalar_lea.vmem [#allocation8], %s278
        %v280 = vld [vmem:[%s238] sm:$0xff]
        %vm281 = vcmp.ne.f32.partialorder %v280, 0.0
        %v282 = vld [vmem:[%s247] sm:$0xff]
        %vm283 = vcmp.ne.f32.partialorder %v282, 0.0
        %vm284 = vmand %vm281, %vm283
        %v285 = vld [vmem:[%s229] sm:$0xff]
        %v286 = vsel %vm284, %v285, -1e+09
        %vm287 = vcmask 64512
        %v288 = vsel %vm287, %v286, -inf
        %289 = vmax.xlane.f32.xlu0 %v288
        %v290 = vpop.xlane.xlu0 %289
        %v291 = vsub.f32 %v286, %v290
        %v292 = vmul.f32 %v291, 1.442695
        %v293 = vpow.pop %v292
        %v294 = vsel %vm287, %v293, 0.0
        %295 = vadd.xlane.f32.xlu0 %v294
        %v296 = vpop.xlane.xlu0 %295
        %v297 = vrcp.pop %v296
        %v298 = vmul.f32 %v293, %v297
        %v299 = vpack.c.bf16 %v298, %v298
        %vm300 = vcmask 60416
        %301 = vst.msk [vmem:[%s279] sm:$0xf] %vm300, %v299
        %s302 = sand.u32 %s129, 1
        %s303 = scalar_lea.sflag [#allocation4], %s302
        %s304 = sand.u32 %s129, 1
        %s305 = smul.addr %s304, 4
        %s306 = scalar_lea.vmem [#allocation8], %s305
        // Predicated region
        $region45: #{tpu_custom_call.1} parent=31 // pred_check
          %p307 = pneg %p139
        $region46: #{tpu_custom_call.1} parent=31 // pred_check_branch
          %309 = sbr.rel (%p307) target = $region48
        $region47: #{tpu_custom_call.1} parent=31 // pred_region
          %s311 = ssub.s32 64, 64
          %312 = vsyncadd %s303, %s311
          %s313 = sadd.s32 %s28, %s27
          %s314 = smul.addr %s313, 64
          %s315 = scalar_lea.hbm %s3, %s314
          %s317 = sshll.u32 %s306, 4
          %s318 = int_to_ptr.vmem [resolvable:$true] %s317
          %320 = dma.vmem_to_hbm [thread:$0]  %s318, 64, %s315, %s303
        $region48: #{tpu_custom_call.1} parent=31 // pred_fallthru
          _
      $region32: #{tpu_custom_call.1} parent=5 // pred_fallthru
        _
      %p321 = scmp.le.s32.totalorder 2, %s18
      // Predicated region
      $region49: #{tpu_custom_call.1} parent=5 // pred_check
        %p322 = pneg %p321
      $region50: #{tpu_custom_call.1} parent=5 // pred_check_branch
        %324 = sbr.rel (%p322) target = $region52
      $region51: #{tpu_custom_call.1} parent=5 // pred_region
        %s325 = ssub.s32 %s18, 2
        // Predicated region
        $region53: #{tpu_custom_call.1} parent=51 // pred_check
          %p326 = pneg %p145
        $region54: #{tpu_custom_call.1} parent=51 // pred_check_branch
          %328 = sbr.rel (%p326) target = $region56
        $region55: #{tpu_custom_call.1} parent=51 // pred_region
          %s329 = sand.u32 %s130, 1
          %s330 = scalar_lea.sflag [#allocation4], %s329
          %s331 = sand.u32 %s130, 1
          %s332 = smul.addr %s331, 4
          %s333 = scalar_lea.vmem [#allocation8], %s332
          %334 = dma.done %s330, 64
        $region56: #{tpu_custom_call.1} parent=51 // pred_fallthru
          _
      $region52: #{tpu_custom_call.1} parent=5 // pred_fallthru
        _
    $region6: #{tpu_custom_call.1} parent=1 // loop_footer
      %s22 = sadd.s32 1, %s18
    $region7: #{tpu_custom_call.1} parent=1 // loop_footer_branch
      %17 = sbr.rel target = $region3
    $region8: #{tpu_custom_call.1} parent=1 // loop_exit
      _
    %335 = vsyncpa [#allocation3], 1
    %s336 = scalar_lea.sflag [#allocation3], 1
    %337 = vsyncpa %s336, 1
    %338 = vsyncpa [#allocation6], 1
    %s339 = scalar_lea.sflag [#allocation6], 1
    %340 = vsyncpa %s339, 1
    %341 = vsyncpa [#allocation4], 1
    %s342 = scalar_lea.sflag [#allocation4], 1
    %343 = vsyncpa %s342, 1

</llo_original>
